<compile_context>
chip_gen: v7x
topology: tpu7x:2x2x1
jax: 0.10.0
libtpu: 0.0.40
codegen_flags: <defaults>
</compile_context>

<pallas_src>
import functools

import jax
import jax.numpy as jnp
from jax.experimental import pallas as pl
from jax.experimental.pallas import tpu as pltpu


def _mlp_kernel(nlayers, x_ref, *refs):
    """Fused MLP forward for one batch tile of TB rows.

    refs = (w0, b0, w1, b1, ..., w_nlayers, b_nlayers, w_last_row, b_last_smem, out)

    Mirrors nn.Sequential:
      Linear(input_size, layer_size)                       (no activation)
      nlayers x [Linear(layer, layer), ReLU, Dropout]      (Dropout = identity, eval mode)
      Linear(layer_size, 1)  -> VPU multiply + lane reduction instead of an N=1 matmul
    """
    out_ref = refs[-1]
    wb = refs[:-1]

    # f32 HBM input; bf16 cast on the VPU is free under the DMA/MXU slack.
    x = x_ref[...].astype(jnp.bfloat16)                    # [TB, in_dim]

    # First linear: bf16 x bf16 MXU matmul, f32 accumulation, f32 bias.
    h = jnp.dot(x, wb[0][...], preferred_element_type=jnp.float32) + wb[1][...]

    # Hidden blocks: Linear -> ReLU -> Dropout(identity).
    for i in range(1, 1 + nlayers):
        w = wb[2 * i][...]                                 # bf16 [L, L]
        b = wb[2 * i + 1][...]                             # f32  [1, L]
        h = jnp.dot(h.astype(jnp.bfloat16), w, preferred_element_type=jnp.float32) + b
        h = jnp.maximum(h, 0.0)

    # Final Linear(layer_size -> 1): VPU broadcast-multiply + XLU lane reduction,
    # then one small XLU transpose so the store is a lane-dense [1, TB] row.
    w_last = wb[-2][...]                                   # f32 [1, L], broadcasts over rows
    b_last = wb[-1][0, 0]                                  # f32 scalar (SMEM)
    logit = jnp.sum(h * w_last, axis=-1, keepdims=True) + b_last   # [TB, 1]
    out_ref[...] = jnp.transpose(logit).reshape(1, 1, -1).astype(out_ref.dtype)


@functools.partial(jax.jit, static_argnames=("nlayers", "tb"))
def mlp_forward(x, params, nlayers, tb=None):
    """x: [batch, input_size] f32 (already flattened).

    params: (layers, (w_last_row, b_last)) from init_params.
    tb: batch-tile rows. Default None -> single grid step (batch rounded up to 8),
        which is optimal on single-TC v5e/v6e for small/medium batches. For very
        large batches pass a multiple of 8 (e.g. 256-512) to get a tiled grid with
        VMEM-resident weights and a "parallel" batch axis (v7x megacore).
    """
    layers, (w_last, b_last) = params
    batch, in_dim = x.shape

    if tb is None:
        tb = max(8, pl.cdiv(batch, 8) * 8)
    b_pad = pl.cdiv(batch, tb) * tb
    grid_n = b_pad // tb

    if b_pad != batch:
        # Zero rows are mathematically inert and sliced off below; fused under jit.
        x = jnp.pad(x, ((0, b_pad - batch), (0, 0)))

    flat_args = []
    for w, b in layers:
        flat_args += [w, b]
    flat_args += [w_last, b_last]

    # x / out advance with the batch grid index; weights & biases use constant
    # index_maps so they are DMA'd once and stay VMEM-resident across grid steps.
    # The scalar final bias lives in SMEM.
    in_specs = [pl.BlockSpec((tb, in_dim), lambda i: (i, 0))]
    for a in flat_args[:-1]:
        in_specs.append(pl.BlockSpec(a.shape, lambda i: (0, 0)))
    in_specs.append(pl.BlockSpec(memory_space=pltpu.MemorySpace.SMEM))

    # Lane-dense output: one [1, TB] row per batch tile (no masked 1-lane stores).
    out_spec = pl.BlockSpec((1, 1, tb), lambda i: (i, 0, 0))

    out = pl.pallas_call(
        functools.partial(_mlp_kernel, nlayers),
        out_shape=jax.ShapeDtypeStruct((grid_n, 1, tb), jnp.float32),
        grid=(grid_n,),
        in_specs=in_specs,
        out_specs=out_spec,
        compiler_params=pltpu.CompilerParams(
            dimension_semantics=("parallel",)),  # shards batch tiles across v7x's 2 TCs
    )(x, *flat_args)

    return out.reshape(b_pad, 1)[:batch]


def init_params(key, input_size, layer_size, nlayers):
    """Deterministic init matching the PyTorch module's layer shapes.

    Weights stored as [in_features, out_features] (transposed vs torch's [out, in]) in
    bf16; biases in f32. The final Linear(layer_size, 1) weight is stored as a
    [1, layer_size] f32 row for the in-kernel lane reduction; its bias is a (1,1) f32
    scalar kept in SMEM.
    """
    dims = [(input_size, layer_size)] + [(layer_size, layer_size)] * nlayers
    layers = []
    for fan_in, fan_out in dims:
        key, kw, kb = jax.random.split(key, 3)
        bound = 1.0 / jnp.sqrt(fan_in)
        w = jax.random.uniform(kw, (fan_in, fan_out), jnp.float32, -bound, bound)
        b = jax.random.uniform(kb, (1, fan_out), jnp.float32, -bound, bound)
        layers.append((w.astype(jnp.bfloat16), b))

    key, kw, kb = jax.random.split(key, 3)
    bound = 1.0 / jnp.sqrt(layer_size)
    w_last = jax.random.uniform(kw, (1, layer_size), jnp.float32, -bound, bound)
    b_last = jax.random.uniform(kb, (1, 1), jnp.float32, -bound, bound)
    return layers, (w_last, b_last)


def reference_forward(x, params, nlayers):
    """Plain-JAX reference mirroring the kernel's bf16-weight / f32-accumulate math."""
    layers, (w_last, b_last) = params
    h = x.astype(jnp.bfloat16).astype(jnp.float32)
    w0, b0 = layers[0]
    h = h @ w0.astype(jnp.float32) + b0
    for i in range(1, 1 + nlayers):
        w, b = layers[i]
        h = h.astype(jnp.bfloat16).astype(jnp.float32) @ w.astype(jnp.float32) + b
        h = jnp.maximum(h, 0.0)
    return jnp.sum(h * w_last, axis=-1, keepdims=True) + b_last[0, 0]


if __name__ == "__main__":
    # Module config: NeuralNetwork(input_size=64, layer_size=128, nlayers=2, dropout=0.1)
    batch, c, w_dim = 32, 4, 16           # raw input [32, 4, 16] -> flatten -> [32, 64]
    input_size = c * w_dim
    layer_size = 128
    nlayers = 2

    key = jax.random.PRNGKey(0)
    key, kx = jax.random.split(key)
    x_raw = jax.random.normal(kx, (batch, c, w_dim), jnp.float32)

    params = init_params(key, input_size, layer_size, nlayers)

    # nn.Flatten(): glue stays in plain JAX.
    x_flat = x_raw.reshape(batch, -1)

    logits = mlp_forward(x_flat, params, nlayers=nlayers)
    logits = jax.block_until_ready(logits)

    ref = reference_forward(x_flat, params, nlayers)
    assert logits.shape == (batch, 1), logits.shape
    err = float(jnp.max(jnp.abs(logits - ref)))
    assert jnp.allclose(logits, ref, atol=2e-3, rtol=2e-3), f"mismatch vs reference, max|d|={err}"

    print("KERNEL_OK")
</pallas_src>

<mosaic_0001>
module attributes {stable_mosaic.version = 11 : i64} {
  func.func @_mlp_kernel(%arg0: i32, %arg1: memref<32x64xf32, #tpu.memory_space<vmem>>, %arg2: memref<64x128xbf16, #tpu.memory_space<vmem>>, %arg3: memref<1x128xf32, #tpu.memory_space<vmem>>, %arg4: memref<128x128xbf16, #tpu.memory_space<vmem>>, %arg5: memref<1x128xf32, #tpu.memory_space<vmem>>, %arg6: memref<128x128xbf16, #tpu.memory_space<vmem>>, %arg7: memref<1x128xf32, #tpu.memory_space<vmem>>, %arg8: memref<1x128xf32, #tpu.memory_space<vmem>>, %arg9: memref<1x1xf32, #tpu.memory_space<smem>>, %arg10: memref<1x1x32xf32, #tpu.memory_space<vmem>>) attributes {dimension_semantics = [#tpu.dimension_semantics<parallel>], iteration_bounds = array<i64: 1>, scalar_prefetch = 0 : i64, scratch_operands = 0 : i64, tpu.core_type = #tpu.core_type<tc>, window_params = [{transform_indices = @transform_0, window_bounds = array<i64: 32, 64>}, {pipeline_mode = #tpu.pipeline_mode<synchronous>, transform_indices = @transform_1, window_bounds = array<i64: 64, 128>}, {pipeline_mode = #tpu.pipeline_mode<synchronous>, transform_indices = @transform_2, window_bounds = array<i64: 1, 128>}, {pipeline_mode = #tpu.pipeline_mode<synchronous>, transform_indices = @transform_3, window_bounds = array<i64: 128, 128>}, {pipeline_mode = #tpu.pipeline_mode<synchronous>, transform_indices = @transform_4, window_bounds = array<i64: 1, 128>}, {pipeline_mode = #tpu.pipeline_mode<synchronous>, transform_indices = @transform_5, window_bounds = array<i64: 128, 128>}, {pipeline_mode = #tpu.pipeline_mode<synchronous>, transform_indices = @transform_6, window_bounds = array<i64: 1, 128>}, {pipeline_mode = #tpu.pipeline_mode<synchronous>, transform_indices = @transform_7, window_bounds = array<i64: 1, 128>}, {transform_indices = @transform_8, window_bounds = array<i64: 1, 1>}, {transform_indices = @transform_9, window_bounds = array<i64: 1, 1, 32>}]} {
    %c0 = arith.constant 0 : index
    %c0_0 = arith.constant 0 : index
    %0 = vector.load %arg1[%c0, %c0_0] : memref<32x64xf32, #tpu.memory_space<vmem>>, vector<32x64xf32>
    %1 = arith.truncf %0 : vector<32x64xf32> to vector<32x64xbf16>
    %c0_1 = arith.constant 0 : index
    %c0_2 = arith.constant 0 : index
    %2 = vector.load %arg2[%c0_1, %c0_2] : memref<64x128xbf16, #tpu.memory_space<vmem>>, vector<64x128xbf16>
    %cst = arith.constant dense<0.000000e+00> : vector<32x128xf32>
    %3 = tpu.matmul %1, %2, %cst {dimension_numbers = #tpu.dot_dimension_numbers<[1], [0], [0], [1], [0, 0, 1, 1], [], []>} : vector<32x64xbf16>, vector<64x128xbf16>, vector<32x128xf32> -> vector<32x128xf32>
    %c0_3 = arith.constant 0 : index
    %c0_4 = arith.constant 0 : index
    %4 = vector.load %arg3[%c0_3, %c0_4] : memref<1x128xf32, #tpu.memory_space<vmem>>, vector<1x128xf32>
    %5 = vector.broadcast %4 : vector<1x128xf32> to vector<32x128xf32>
    %6 = arith.addf %3, %5 : vector<32x128xf32>
    %c0_5 = arith.constant 0 : index
    %c0_6 = arith.constant 0 : index
    %7 = vector.load %arg4[%c0_5, %c0_6] : memref<128x128xbf16, #tpu.memory_space<vmem>>, vector<128x128xbf16>
    %c0_7 = arith.constant 0 : index
    %c0_8 = arith.constant 0 : index
    %8 = vector.load %arg5[%c0_7, %c0_8] : memref<1x128xf32, #tpu.memory_space<vmem>>, vector<1x128xf32>
    %9 = arith.truncf %6 : vector<32x128xf32> to vector<32x128xbf16>
    %cst_9 = arith.constant dense<0.000000e+00> : vector<32x128xf32>
    %10 = tpu.matmul %9, %7, %cst_9 {dimension_numbers = #tpu.dot_dimension_numbers<[1], [0], [0], [1], [0, 0, 1, 1], [], []>} : vector<32x128xbf16>, vector<128x128xbf16>, vector<32x128xf32> -> vector<32x128xf32>
    %11 = vector.broadcast %8 : vector<1x128xf32> to vector<32x128xf32>
    %12 = arith.addf %10, %11 : vector<32x128xf32>
    %cst_10 = arith.constant 0.000000e+00 : f32
    %13 = vector.broadcast %cst_10 : f32 to vector<32x128xf32>
    %14 = arith.maximumf %12, %13 : vector<32x128xf32>
    %c0_11 = arith.constant 0 : index
    %c0_12 = arith.constant 0 : index
    %15 = vector.load %arg6[%c0_11, %c0_12] : memref<128x128xbf16, #tpu.memory_space<vmem>>, vector<128x128xbf16>
    %c0_13 = arith.constant 0 : index
    %c0_14 = arith.constant 0 : index
    %16 = vector.load %arg7[%c0_13, %c0_14] : memref<1x128xf32, #tpu.memory_space<vmem>>, vector<1x128xf32>
    %17 = arith.truncf %14 : vector<32x128xf32> to vector<32x128xbf16>
    %cst_15 = arith.constant dense<0.000000e+00> : vector<32x128xf32>
    %18 = tpu.matmul %17, %15, %cst_15 {dimension_numbers = #tpu.dot_dimension_numbers<[1], [0], [0], [1], [0, 0, 1, 1], [], []>} : vector<32x128xbf16>, vector<128x128xbf16>, vector<32x128xf32> -> vector<32x128xf32>
    %19 = vector.broadcast %16 : vector<1x128xf32> to vector<32x128xf32>
    %20 = arith.addf %18, %19 : vector<32x128xf32>
    %cst_16 = arith.constant 0.000000e+00 : f32
    %21 = vector.broadcast %cst_16 : f32 to vector<32x128xf32>
    %22 = arith.maximumf %20, %21 : vector<32x128xf32>
    %c0_17 = arith.constant 0 : index
    %c0_18 = arith.constant 0 : index
    %23 = vector.load %arg8[%c0_17, %c0_18] : memref<1x128xf32, #tpu.memory_space<vmem>>, vector<1x128xf32>
    %c0_19 = arith.constant 0 : index
    %c0_20 = arith.constant 0 : index
    %24 = memref.load %arg9[%c0_19, %c0_20] : memref<1x1xf32, #tpu.memory_space<smem>>
    %25 = vector.broadcast %23 : vector<1x128xf32> to vector<32x128xf32>
    %26 = arith.mulf %22, %25 : vector<32x128xf32>
    %cst_21 = arith.constant dense<0.000000e+00> : vector<32xf32>
    %27 = vector.multi_reduction <add>, %26, %cst_21 [1] : vector<32x128xf32> to vector<32xf32>
    %28 = vector.shape_cast %27 : vector<32xf32> to vector<32x1xf32>
    %29 = vector.broadcast %24 : f32 to vector<32x1xf32>
    %30 = arith.addf %28, %29 : vector<32x1xf32>
    %31 = tpu.transpose %30, [1, 0] : vector<32x1xf32> -> vector<1x32xf32>
    %32 = vector.shape_cast %31 : vector<1x32xf32> to vector<1x1x32xf32>
    %c0_22 = arith.constant 0 : index
    %c0_23 = arith.constant 0 : index
    %c0_24 = arith.constant 0 : index
    %33 = vector.load %arg10[%c0_22, %c0_23, %c0_24] : memref<1x1x32xf32, #tpu.memory_space<vmem>>, vector<1x1x32xf32>
    tpu.vector_store %arg10[%c0_22, %c0_23, %c0_24], %32 {strides = array<i32>} : memref<1x1x32xf32, #tpu.memory_space<vmem>>, vector<1x1x32xf32>,
    return
  }
  func.func @transform_0(%arg0: i32) -> (i32, i32) {
    %c0_i32 = arith.constant 0 : i32
    %c0_i32_0 = arith.constant 0 : i32
    return %arg0, %c0_i32 : i32, i32
  }
  func.func @transform_1(%arg0: i32) -> (i32, i32) {
    %c0_i32 = arith.constant 0 : i32
    %c0_i32_0 = arith.constant 0 : i32
    %c0_i32_1 = arith.constant 0 : i32
    return %c0_i32, %c0_i32_0 : i32, i32
  }
  func.func @transform_2(%arg0: i32) -> (i32, i32) {
    %c0_i32 = arith.constant 0 : i32
    %c0_i32_0 = arith.constant 0 : i32
    %c0_i32_1 = arith.constant 0 : i32
    return %c0_i32, %c0_i32_0 : i32, i32
  }
  func.func @transform_3(%arg0: i32) -> (i32, i32) {
    %c0_i32 = arith.constant 0 : i32
    %c0_i32_0 = arith.constant 0 : i32
    %c0_i32_1 = arith.constant 0 : i32
    return %c0_i32, %c0_i32_0 : i32, i32
  }
  func.func @transform_4(%arg0: i32) -> (i32, i32) {
    %c0_i32 = arith.constant 0 : i32
    %c0_i32_0 = arith.constant 0 : i32
    %c0_i32_1 = arith.constant 0 : i32
    return %c0_i32, %c0_i32_0 : i32, i32
  }
  func.func @transform_5(%arg0: i32) -> (i32, i32) {
    %c0_i32 = arith.constant 0 : i32
    %c0_i32_0 = arith.constant 0 : i32
    %c0_i32_1 = arith.constant 0 : i32
    return %c0_i32, %c0_i32_0 : i32, i32
  }
  func.func @transform_6(%arg0: i32) -> (i32, i32) {
    %c0_i32 = arith.constant 0 : i32
    %c0_i32_0 = arith.constant 0 : i32
    %c0_i32_1 = arith.constant 0 : i32
    return %c0_i32, %c0_i32_0 : i32, i32
  }
  func.func @transform_7(%arg0: i32) -> (i32, i32) {
    %c0_i32 = arith.constant 0 : i32
    %c0_i32_0 = arith.constant 0 : i32
    %c0_i32_1 = arith.constant 0 : i32
    return %c0_i32, %c0_i32_0 : i32, i32
  }
  func.func @transform_8(%arg0: i32) -> (i32, i32) {
    %c0_i32 = arith.constant 0 : i32
    %c0_i32_0 = arith.constant 0 : i32
    %c0_i32_1 = arith.constant 0 : i32
    return %c0_i32, %c0_i32_0 : i32, i32
  }
  func.func @transform_9(%arg0: i32) -> (i32, i32, i32) {
    %c0_i32 = arith.constant 0 : i32
    %c0_i32_0 = arith.constant 0 : i32
    %c0_i32_1 = arith.constant 0 : i32
    return %arg0, %c0_i32, %c0_i32_0 : i32, i32, i32
  }
}

</mosaic_0001>

<llo_original>
// kernel: mlp_forward.1
$region0: #{mlp_forward.1}
  #allocation0 [shape = 'u32[]', space=smem, size = 0x4, offset = 0x4, fixed_abs, tag = 'smem constant byte address 0x4 - core index']
  #allocation1 [shape = 'u32[144,128]{1,0:T(1,128)}', space=vmem, size = 0x12000, scoped, tag = 'internal scratch']
  #allocation2 [shape = 'f32[1,1]{1,0:T(1,128)S(6)}', space=smem, size = 0x200, scoped, tag = 'scoped memory for mlp_forward.1']
  %s0 = inlined_call_operand.hbm [shape: f32[32,64], index: 0, kind: input, shape index: {}]
  %s1 = inlined_call_operand.hbm [shape: bf16[64,128], index: 1, kind: input, shape index: {}]
  %s2 = inlined_call_operand.vmem [shape: f32[1,128], index: 2, kind: input, shape index: {}]
  %s3 = inlined_call_operand.hbm [shape: bf16[128,128], index: 3, kind: input, shape index: {}]
  %s4 = inlined_call_operand.vmem [shape: f32[1,128], index: 4, kind: input, shape index: {}]
  %s5 = inlined_call_operand.hbm [shape: bf16[128,128], index: 5, kind: input, shape index: {}]
  %s6 = inlined_call_operand.vmem [shape: f32[1,128], index: 6, kind: input, shape index: {}]
  %s7 = inlined_call_operand.vmem [shape: f32[1,128], index: 7, kind: input, shape index: {}]
  %s8 = inlined_call_operand.<no memory space> [shape: f32[1,1], index: 8, kind: input, shape index: {}]
  %s9 = inlined_call_operand.hbm [shape: f32[1,1,32], index: 9, kind: output, shape index: {}]
  %s10 = sld [smem:[#allocation0]]
  $region62: #{mlp_forward.1} parent=0
    _
  %s12 = ssub.s32 1, %s10
  %s13 = scalar_select 0, %s12, %s10
  %14 = sst [smem:[#allocation2]] %s8
  $region1: #{mlp_forward.1} parent=0
    #allocation3 [shape = 'u8[16384]{0}', space=vmem, size = 0x4000, scoped, tag = 'input window, operand 0, single buffered']
    #allocation4 [shape = 's32[1]{0}', space=sflag, size = 0x4, scoped, tag = 'scoped memory for mlp_forward.1']
    #allocation5 [shape = 's32[1]{0}', space=sflag, size = 0x4, scoped, tag = 'scoped memory for mlp_forward.1']
    #allocation6 [shape = 'u8[16384]{0}', space=vmem, size = 0x4000, scoped, tag = 'input window, operand 1, single buffered']
    #allocation7 [shape = 's32[1]{0}', space=sflag, size = 0x4, scoped, tag = 'scoped memory for mlp_forward.1']
    #allocation8 [shape = 'u8[32768]{0}', space=vmem, size = 0x8000, scoped, tag = 'input window, operand 3, single buffered']
    #allocation9 [shape = 'u8[32768]{0}', space=vmem, size = 0x8000, scoped, tag = 'input window, operand 5, single buffered']
    #allocation10 [shape = 's32[1]{0}', space=sflag, size = 0x4, scoped, tag = 'scoped memory for mlp_forward.1']
    #allocation11 [shape = 'u8[512]{0}', space=vmem, size = 0x400, scoped, tag = 'output window, operand 0, single buffered']
    %15 = vsyncpa [#allocation4], 0
    %16 = vsyncpa [#allocation7], 0
    %17 = vsyncpa [#allocation10], 0
    %18 = vsyncpa [#allocation5], 0
    // Predicated region
    $region2: #{mlp_forward.1} parent=1 // pred_check
      _
    $region3: #{mlp_forward.1} parent=1 // pred_check_branch
      %20 = sbr.rel (0) target = $region5
    $region4: #{mlp_forward.1} parent=1 // pred_region
      %s22 = ssub.s32 512, 512
      %23 = vsyncadd [#allocation4], %s22
      %s24 = sshll.u32 [#allocation3], 4
      %s25 = int_to_ptr.vmem [resolvable:$true] %s24
      %30 = dma.hbm_to_vmem [thread:$0]  %s0, 512, %s25, [#allocation4], 128, 128, 8
    $region5: #{mlp_forward.1} parent=1 // pred_fallthru
      _
    // Predicated region
    $region6: #{mlp_forward.1} parent=1 // pred_check
      _
    $region7: #{mlp_forward.1} parent=1 // pred_check_branch
      %32 = sbr.rel (0) target = $region9
    $region8: #{mlp_forward.1} parent=1 // pred_region
      %s34 = ssub.s32 512, 512
      %35 = vsyncadd [#allocation7], %s34
      %s36 = sshll.u32 [#allocation6], 4
      %s37 = int_to_ptr.vmem [resolvable:$true] %s36
      %42 = dma.hbm_to_vmem [thread:$0]  %s1, 512, %s37, [#allocation7], 64, 64, 4
    $region9: #{mlp_forward.1} parent=1 // pred_fallthru
      _
    // Predicated region
    $region10: #{mlp_forward.1} parent=1 // pred_check
      _
    $region11: #{mlp_forward.1} parent=1 // pred_check_branch
      %44 = sbr.rel (0) target = $region13
    $region12: #{mlp_forward.1} parent=1 // pred_region
      _
    $region13: #{mlp_forward.1} parent=1 // pred_fallthru
      _
    // Predicated region
    $region14: #{mlp_forward.1} parent=1 // pred_check
      _
    $region15: #{mlp_forward.1} parent=1 // pred_check_branch
      %46 = sbr.rel (0) target = $region17
    $region16: #{mlp_forward.1} parent=1 // pred_region
      %s48 = ssub.s32 1024, 1024
      %49 = vsyncadd [#allocation7], %s48
      %s50 = sshll.u32 [#allocation8], 4
      %s51 = int_to_ptr.vmem [resolvable:$true] %s50
      %56 = dma.hbm_to_vmem [thread:$0]  %s3, 1024, %s51, [#allocation7], 64, 64, 4
    $region17: #{mlp_forward.1} parent=1 // pred_fallthru
      _
    // Predicated region
    $region18: #{mlp_forward.1} parent=1 // pred_check
      _
    $region19: #{mlp_forward.1} parent=1 // pred_check_branch
      %58 = sbr.rel (0) target = $region21
    $region20: #{mlp_forward.1} parent=1 // pred_region
      _
    $region21: #{mlp_forward.1} parent=1 // pred_fallthru
      _
    // Predicated region
    $region22: #{mlp_forward.1} parent=1 // pred_check
      _
    $region23: #{mlp_forward.1} parent=1 // pred_check_branch
      %60 = sbr.rel (0) target = $region25
    $region24: #{mlp_forward.1} parent=1 // pred_region
      %s62 = ssub.s32 1024, 1024
      %63 = vsyncadd [#allocation10], %s62
      %s64 = sshll.u32 [#allocation9], 4
      %s65 = int_to_ptr.vmem [resolvable:$true] %s64
      %70 = dma.hbm_to_vmem [thread:$0]  %s5, 1024, %s65, [#allocation10], 64, 64, 4
    $region25: #{mlp_forward.1} parent=1 // pred_fallthru
      _
    // Predicated region
    $region26: #{mlp_forward.1} parent=1 // pred_check
      _
    $region27: #{mlp_forward.1} parent=1 // pred_check_branch
      %72 = sbr.rel (0) target = $region29
    $region28: #{mlp_forward.1} parent=1 // pred_region
      _
    $region29: #{mlp_forward.1} parent=1 // pred_fallthru
      _
    // Predicated region
    $region30: #{mlp_forward.1} parent=1 // pred_check
      _
    $region31: #{mlp_forward.1} parent=1 // pred_check_branch
      %74 = sbr.rel (0) target = $region33
    $region32: #{mlp_forward.1} parent=1 // pred_region
      _
    $region33: #{mlp_forward.1} parent=1 // pred_fallthru
      _
    // Predicated region
    $region34: #{mlp_forward.1} parent=1 // pred_check
      _
    $region35: #{mlp_forward.1} parent=1 // pred_check_branch
      %76 = sbr.rel (0) target = $region37
    $region36: #{mlp_forward.1} parent=1 // pred_region
      _
    $region37: #{mlp_forward.1} parent=1 // pred_fallthru
      _
    // Predicated region
    $region38: #{mlp_forward.1} parent=1 // pred_check
      _
    $region39: #{mlp_forward.1} parent=1 // pred_check_branch
      %78 = sbr.rel (0) target = $region41
    $region40: #{mlp_forward.1} parent=1 // pred_region
      %79 = dma.done [#allocation4], 512
    $region41: #{mlp_forward.1} parent=1 // pred_fallthru
      _
    // Predicated region
    $region42: #{mlp_forward.1} parent=1 // pred_check
      _
    $region43: #{mlp_forward.1} parent=1 // pred_check_branch
      %81 = sbr.rel (0) target = $region45
    $region44: #{mlp_forward.1} parent=1 // pred_region
      %82 = dma.done [#allocation7], 512
    $region45: #{mlp_forward.1} parent=1 // pred_fallthru
      _
    // Predicated region
    $region46: #{mlp_forward.1} parent=1 // pred_check
      _
    $region47: #{mlp_forward.1} parent=1 // pred_check_branch
      %84 = sbr.rel (0) target = $region49
    $region48: #{mlp_forward.1} parent=1 // pred_region
      %85 = dma.done [#allocation7], 1024
    $region49: #{mlp_forward.1} parent=1 // pred_fallthru
      _
    // Predicated region
    $region50: #{mlp_forward.1} parent=1 // pred_check
      _
    $region51: #{mlp_forward.1} parent=1 // pred_check_branch
      %87 = sbr.rel (0) target = $region53
    $region52: #{mlp_forward.1} parent=1 // pred_region
      %88 = dma.done [#allocation10], 1024
    $region53: #{mlp_forward.1} parent=1 // pred_fallthru
      _
    %v90 = vld [vmem:[#allocation3] sm:$0xff]
    %v91 = vld [vmem:[#allocation3 + $0x8] sm:$0xff]
    %v92 = vld [vmem:[#allocation3 + $0x10] sm:$0xff]
    %v93 = vld [vmem:[#allocation3 + $0x18] sm:$0xff]
    %v94 = vpack.c.bf16 %v91, %v90
    %v95 = vpack.c.bf16 %v93, %v92
    %v96 = vld [vmem:[#allocation6] sm:$0xf]
    %v97 = vld [vmem:[#allocation6 + $0x4] sm:$0xf]
    %v98 = vld [vmem:[#allocation6 + $0x8] sm:$0xf]
    %v99 = vld [vmem:[#allocation6 + $0xc] sm:$0xf]
    %v100 = vld [vmem:[#allocation6 + $0x10] sm:$0xf]
    %v101 = vld [vmem:[#allocation6 + $0x14] sm:$0xf]
    %v102 = vld [vmem:[#allocation6 + $0x18] sm:$0xf]
    %v103 = vld [vmem:[#allocation6 + $0x1c] sm:$0xf]
    %v104 = vld [vmem:[%s2] sm:$0x1]
    %v106 = vlaneseq
    %v107 = vshrl.u32 %v106, 7
    %v108 = vsub.s32 0, %v107
    %v109 = vrot.slane %v104, %v108
    %v119 = vunpack.c.l.b16 %v96
    %v120 = vunpack.c.l.b16 %v97
    %v121 = vunpack.c.l.b16 %v98
    %v122 = vunpack.c.l.b16 %v99
    %v123 = vunpack.c.l.b16 %v100
    %v124 = vunpack.c.l.b16 %v101
    %v125 = vunpack.c.l.b16 %v102
    %v126 = vunpack.c.l.b16 %v103
    %v127 = vpack.c.b16 %v120, %v119
    %v128 = vpack.c.b16 %v122, %v121
    %v129 = vpack.c.b16 %v124, %v123
    %v130 = vpack.c.b16 %v126, %v125
    %vm135 = vcmask 523264
    %v137 = vsel %vm135, %v94, 0
    %v140 = vsel %vm135, %v95, 0
    %142 = vmatprep.subr.bf16.mxu0 0
    %143 = vmatpush1.bf16.msra.mxu0 %v127
    %144 = vmatprep.subr.bf16.mxu0 0
    %145 = vmatpush1.bf16.msra.mxu0 %v128
    %146 = vmatprep.subr.bf16.mxu0 0
    %147 = vmatpush1.bf16.msra.mxu0 %v129
    %148 = vmatprep.subr.bf16.mxu0 0
    %149 = vmatpush1.bf16.msra.mxu0 %v130
    %150 = vmatprep.subr.bf16.mxu0 0
    %151 = vmatpush1.bf16.msra.mxu0 0
    %152 = vmatprep.subr.bf16.mxu0 0
    %153 = vmatpush1.bf16.msra.mxu0 0
    %154 = vmatprep.subr.bf16.mxu0 0
    %155 = vmatpush1.bf16.msra.mxu0 0
    %156 = vmatprep.subr.bf16.mxu0 0
    %157 = vmatpush1.bf16.msra.mxu0 0
    %158 = vmatprep.subr.bf16.mxu0 0
    %159 = vmatpush1.bf16.msra.mxu0 0
    %160 = vmatprep.subr.bf16.mxu0 0
    %161 = vmatpush1.bf16.msra.mxu0 0
    %162 = vmatprep.subr.bf16.mxu0 0
    %163 = vmatpush1.bf16.msra.mxu0 0
    %164 = vmatprep.subr.bf16.mxu0 0
    %165 = vmatpush1.bf16.msra.mxu0 0
    %166 = vmatprep.subr.bf16.mxu0 0
    %167 = vmatpush1.bf16.msra.mxu0 0
    %168 = vmatprep.subr.bf16.mxu0 0
    %169 = vmatpush1.bf16.msra.mxu0 0
    %170 = vmatprep.subr.bf16.mxu0 0
    %171 = vmatpush1.bf16.msra.mxu0 0
    %172 = vmatprep.subr.bf16.mxu0 0
    %173 = vmatpush1.bf16.msra.mxu0 0
    %174 = vmatprep.mubr.bf16.mxu0 0
    %175 = vmatmul.mubr.bf16.gmra.mrb[0].mxu0 %v137
    %v176 = vpop.f32.mrb[0].mxu0
    %v177 = vadd.f32 %v109, %v176
    %v178 = vpop.f32.mrb[0].mxu0
    %v179 = vpop.f32.mrb[0].mxu0
    %v180 = vadd.f32 %v109, %v179
    %v181 = vpop.f32.mrb[0].mxu0
    %182 = vmatprep.mubr.bf16.mxu0 0
    %183 = vmatmul.mubr.bf16.gmra.mrb[0].mxu0 %v140
    %v184 = vpop.f32.mrb[0].mxu0
    %v185 = vadd.f32 %v109, %v184
    %v186 = vpop.f32.mrb[0].mxu0
    %v187 = vpop.f32.mrb[0].mxu0
    %v188 = vadd.f32 %v109, %v187
    %v189 = vpop.f32.mrb[0].mxu0
    %190 = vdwg.mxu0
    %v191 = vld [vmem:[#allocation8] sm:$0xf]
    %v192 = vld [vmem:[#allocation8 + $0x4] sm:$0xf]
    %v193 = vld [vmem:[#allocation8 + $0x8] sm:$0xf]
    %v194 = vld [vmem:[#allocation8 + $0xc] sm:$0xf]
    %v195 = vld [vmem:[#allocation8 + $0x10] sm:$0xf]
    %v196 = vld [vmem:[#allocation8 + $0x14] sm:$0xf]
    %v197 = vld [vmem:[#allocation8 + $0x18] sm:$0xf]
    %v198 = vld [vmem:[#allocation8 + $0x1c] sm:$0xf]
    %v199 = vld [vmem:[#allocation8 + $0x20] sm:$0xf]
    %v200 = vld [vmem:[#allocation8 + $0x24] sm:$0xf]
    %v201 = vld [vmem:[#allocation8 + $0x28] sm:$0xf]
    %v202 = vld [vmem:[#allocation8 + $0x2c] sm:$0xf]
    %v203 = vld [vmem:[#allocation8 + $0x30] sm:$0xf]
    %v204 = vld [vmem:[#allocation8 + $0x34] sm:$0xf]
    %v205 = vld [vmem:[#allocation8 + $0x38] sm:$0xf]
    %v206 = vld [vmem:[#allocation8 + $0x3c] sm:$0xf]
    %v207 = vld [vmem:[%s4] sm:$0x1]
    %v208 = vpack.c.bf16 %v180, %v177
    %v209 = vpack.c.bf16 %v188, %v185
    %v211 = vlaneseq
    %v212 = vshrl.u32 %v211, 7
    %v213 = vsub.s32 0, %v212
    %v214 = vrot.slane %v207, %v213
    %v232 = vunpack.c.l.b16 %v191
    %v233 = vunpack.c.l.b16 %v192
    %v234 = vunpack.c.l.b16 %v193
    %v235 = vunpack.c.l.b16 %v194
    %v236 = vunpack.c.l.b16 %v195
    %v237 = vunpack.c.l.b16 %v196
    %v238 = vunpack.c.l.b16 %v197
    %v239 = vunpack.c.l.b16 %v198
    %v240 = vunpack.c.l.b16 %v199
    %v241 = vunpack.c.l.b16 %v200
    %v242 = vunpack.c.l.b16 %v201
    %v243 = vunpack.c.l.b16 %v202
    %v244 = vunpack.c.l.b16 %v203
    %v245 = vunpack.c.l.b16 %v204
    %v246 = vunpack.c.l.b16 %v205
    %v247 = vunpack.c.l.b16 %v206
    %v248 = vpack.c.b16 %v233, %v232
    %v249 = vpack.c.b16 %v235, %v234
    %v250 = vpack.c.b16 %v237, %v236
    %v251 = vpack.c.b16 %v239, %v238
    %v252 = vpack.c.b16 %v241, %v240
    %v253 = vpack.c.b16 %v243, %v242
    %v254 = vpack.c.b16 %v245, %v244
    %v255 = vpack.c.b16 %v247, %v246
    %264 = vmatprep.subr.bf16.mxu0 0
    %265 = vmatpush1.bf16.msra.mxu0 %v248
    %266 = vmatprep.subr.bf16.mxu0 0
    %267 = vmatpush1.bf16.msra.mxu0 %v249
    %268 = vmatprep.subr.bf16.mxu0 0
    %269 = vmatpush1.bf16.msra.mxu0 %v250
    %270 = vmatprep.subr.bf16.mxu0 0
    %271 = vmatpush1.bf16.msra.mxu0 %v251
    %272 = vmatprep.subr.bf16.mxu0 0
    %273 = vmatpush1.bf16.msra.mxu0 %v252
    %274 = vmatprep.subr.bf16.mxu0 0
    %275 = vmatpush1.bf16.msra.mxu0 %v253
    %276 = vmatprep.subr.bf16.mxu0 0
    %277 = vmatpush1.bf16.msra.mxu0 %v254
    %278 = vmatprep.subr.bf16.mxu0 0
    %279 = vmatpush1.bf16.msra.mxu0 %v255
    %280 = vmatprep.subr.bf16.mxu0 0
    %281 = vmatpush1.bf16.msra.mxu0 0
    %282 = vmatprep.subr.bf16.mxu0 0
    %283 = vmatpush1.bf16.msra.mxu0 0
    %284 = vmatprep.subr.bf16.mxu0 0
    %285 = vmatpush1.bf16.msra.mxu0 0
    %286 = vmatprep.subr.bf16.mxu0 0
    %287 = vmatpush1.bf16.msra.mxu0 0
    %288 = vmatprep.subr.bf16.mxu0 0
    %289 = vmatpush1.bf16.msra.mxu0 0
    %290 = vmatprep.subr.bf16.mxu0 0
    %291 = vmatpush1.bf16.msra.mxu0 0
    %292 = vmatprep.subr.bf16.mxu0 0
    %293 = vmatpush1.bf16.msra.mxu0 0
    %294 = vmatprep.subr.bf16.mxu0 0
    %295 = vmatpush1.bf16.msra.mxu0 0
    %296 = vmatprep.mubr.bf16.mxu0 0
    %297 = vmatmul.mubr.bf16.gmra.mrb[0].mxu0 %v208
    %v298 = vpop.f32.mrb[0].mxu0
    %v299 = vadd.f32 %v214, %v298
    %v300 = vpop.f32.mrb[0].mxu0
    %v301 = vpop.f32.mrb[0].mxu0
    %v302 = vadd.f32 %v214, %v301
    %v303 = vpop.f32.mrb[0].mxu0
    %304 = vmatprep.mubr.bf16.mxu0 0
    %305 = vmatmul.mubr.bf16.gmra.mrb[0].mxu0 %v209
    %v306 = vpop.f32.mrb[0].mxu0
    %v307 = vadd.f32 %v214, %v306
    %v308 = vpop.f32.mrb[0].mxu0
    %v309 = vpop.f32.mrb[0].mxu0
    %v310 = vadd.f32 %v214, %v309
    %v311 = vpop.f32.mrb[0].mxu0
    %312 = vdwg.mxu0
    %v313 = vmax.f32 %v299, 0.0
    %v314 = vmax.f32 %v302, 0.0
    %v315 = vmax.f32 %v307, 0.0
    %v316 = vmax.f32 %v310, 0.0
    %v317 = vld [vmem:[#allocation9] sm:$0xf]
    %v318 = vld [vmem:[#allocation9 + $0x4] sm:$0xf]
    %v319 = vld [vmem:[#allocation9 + $0x8] sm:$0xf]
    %v320 = vld [vmem:[#allocation9 + $0xc] sm:$0xf]
    %v321 = vld [vmem:[#allocation9 + $0x10] sm:$0xf]
    %v322 = vld [vmem:[#allocation9 + $0x14] sm:$0xf]
    %v323 = vld [vmem:[#allocation9 + $0x18] sm:$0xf]
    %v324 = vld [vmem:[#allocation9 + $0x1c] sm:$0xf]
    %v325 = vld [vmem:[#allocation9 + $0x20] sm:$0xf]
    %v326 = vld [vmem:[#allocation9 + $0x24] sm:$0xf]
    %v327 = vld [vmem:[#allocation9 + $0x28] sm:$0xf]
    %v328 = vld [vmem:[#allocation9 + $0x2c] sm:$0xf]
    %v329 = vld [vmem:[#allocation9 + $0x30] sm:$0xf]
    %v330 = vld [vmem:[#allocation9 + $0x34] sm:$0xf]
    %v331 = vld [vmem:[#allocation9 + $0x38] sm:$0xf]
    %v332 = vld [vmem:[#allocation9 + $0x3c] sm:$0xf]
    %v333 = vld [vmem:[%s6] sm:$0x1]
    %v334 = vpack.c.bf16 %v314, %v313
    %v335 = vpack.c.bf16 %v316, %v315
    %v337 = vlaneseq
    %v338 = vshrl.u32 %v337, 7
    %v339 = vsub.s32 0, %v338
    %v340 = vrot.slane %v333, %v339
    %v358 = vunpack.c.l.b16 %v317
    %v359 = vunpack.c.l.b16 %v318
    %v360 = vunpack.c.l.b16 %v319
    %v361 = vunpack.c.l.b16 %v320
    %v362 = vunpack.c.l.b16 %v321
    %v363 = vunpack.c.l.b16 %v322
    %v364 = vunpack.c.l.b16 %v323
    %v365 = vunpack.c.l.b16 %v324
    %v366 = vunpack.c.l.b16 %v325
    %v367 = vunpack.c.l.b16 %v326
    %v368 = vunpack.c.l.b16 %v327
    %v369 = vunpack.c.l.b16 %v328
    %v370 = vunpack.c.l.b16 %v329
    %v371 = vunpack.c.l.b16 %v330
    %v372 = vunpack.c.l.b16 %v331
    %v373 = vunpack.c.l.b16 %v332
    %v374 = vpack.c.b16 %v359, %v358
    %v375 = vpack.c.b16 %v361, %v360
    %v376 = vpack.c.b16 %v363, %v362
    %v377 = vpack.c.b16 %v365, %v364
    %v378 = vpack.c.b16 %v367, %v366
    %v379 = vpack.c.b16 %v369, %v368
    %v380 = vpack.c.b16 %v371, %v370
    %v381 = vpack.c.b16 %v373, %v372
    %390 = vmatprep.subr.bf16.mxu0 0
    %391 = vmatpush1.bf16.msra.mxu0 %v374
    %392 = vmatprep.subr.bf16.mxu0 0
    %393 = vmatpush1.bf16.msra.mxu0 %v375
    %394 = vmatprep.subr.bf16.mxu0 0
    %395 = vmatpush1.bf16.msra.mxu0 %v376
    %396 = vmatprep.subr.bf16.mxu0 0
    %397 = vmatpush1.bf16.msra.mxu0 %v377
    %398 = vmatprep.subr.bf16.mxu0 0
    %399 = vmatpush1.bf16.msra.mxu0 %v378
    %400 = vmatprep.subr.bf16.mxu0 0
    %401 = vmatpush1.bf16.msra.mxu0 %v379
    %402 = vmatprep.subr.bf16.mxu0 0
    %403 = vmatpush1.bf16.msra.mxu0 %v380
    %404 = vmatprep.subr.bf16.mxu0 0
    %405 = vmatpush1.bf16.msra.mxu0 %v381
    %406 = vmatprep.subr.bf16.mxu0 0
    %407 = vmatpush1.bf16.msra.mxu0 0
    %408 = vmatprep.subr.bf16.mxu0 0
    %409 = vmatpush1.bf16.msra.mxu0 0
    %410 = vmatprep.subr.bf16.mxu0 0
    %411 = vmatpush1.bf16.msra.mxu0 0
    %412 = vmatprep.subr.bf16.mxu0 0
    %413 = vmatpush1.bf16.msra.mxu0 0
    %414 = vmatprep.subr.bf16.mxu0 0
    %415 = vmatpush1.bf16.msra.mxu0 0
    %416 = vmatprep.subr.bf16.mxu0 0
    %417 = vmatpush1.bf16.msra.mxu0 0
    %418 = vmatprep.subr.bf16.mxu0 0
    %419 = vmatpush1.bf16.msra.mxu0 0
    %420 = vmatprep.subr.bf16.mxu0 0
    %421 = vmatpush1.bf16.msra.mxu0 0
    %422 = vmatprep.mubr.bf16.mxu0 0
    %423 = vmatmul.mubr.bf16.gmra.mrb[0].mxu0 %v334
    %v424 = vpop.f32.mrb[0].mxu0
    %v425 = vadd.f32 %v340, %v424
    %v426 = vpop.f32.mrb[0].mxu0
    %v427 = vpop.f32.mrb[0].mxu0
    %v428 = vadd.f32 %v340, %v427
    %v429 = vpop.f32.mrb[0].mxu0
    %430 = vmatprep.mubr.bf16.mxu0 0
    %431 = vmatmul.mubr.bf16.gmra.mrb[0].mxu0 %v335
    %v432 = vpop.f32.mrb[0].mxu0
    %v433 = vadd.f32 %v340, %v432
    %v434 = vpop.f32.mrb[0].mxu0
    %v435 = vpop.f32.mrb[0].mxu0
    %v436 = vadd.f32 %v340, %v435
    %v437 = vpop.f32.mrb[0].mxu0
    %438 = vdwg.mxu0
    %v439 = vmax.f32 %v425, 0.0
    %v440 = vmax.f32 %v428, 0.0
    %v441 = vmax.f32 %v433, 0.0
    %v442 = vmax.f32 %v436, 0.0
    %v443 = vld [vmem:[%s7] sm:$0x1]
    %s444 = sld [smem:[#allocation2]]
    %v446 = vlaneseq
    %v447 = vshrl.u32 %v446, 7
    %v448 = vsub.s32 0, %v447
    %v449 = vrot.slane %v443, %v448
    %v451 = vmul.f32 %v439, %v449
    %v452 = vmul.f32 %v440, %v449
    %v453 = vmul.f32 %v441, %v449
    %v454 = vmul.f32 %v442, %v449
    %455 = vadd.xlane.f32.xlu0 %v451
    %v456 = vpop.xlane.xlu0 %455
    %457 = vadd.xlane.f32.xlu0 %v452
    %v458 = vpop.xlane.xlu0 %457
    %459 = vadd.xlane.f32.xlu0 %v453
    %v460 = vpop.xlane.xlu0 %459
    %461 = vadd.xlane.f32.xlu0 %v454
    %v462 = vpop.xlane.xlu0 %461
    %v463 = vstv %s444
    %v464 = vadd.f32 %v456, %v463
    %v465 = vadd.f32 %v458, %v463
    %v466 = vadd.f32 %v460, %v463
    %v467 = vadd.f32 %v462, %v463
    %468 = vxpose.xlu0.b32.start [1/16] %v464, 128
    %469 = vxpose.xlu0.b32.cont [2/16] %v465, 128
    %470 = vxpose.xlu0.b32.cont [3/16] %v466, 128
    %471 = vxpose.xlu0.b32.cont [4/16] %v467, 128
    %472 = vxpose.xlu0.b32.cont [5/16] 0.0, 128
    %473 = vxpose.xlu0.b32.cont [6/16] 0.0, 128
    %474 = vxpose.xlu0.b32.cont [7/16] 0.0, 128
    %475 = vxpose.xlu0.b32.cont [8/16] 0.0, 128
    %476 = vxpose.xlu0.b32.cont [9/16] 0.0, 128
    %477 = vxpose.xlu0.b32.cont [10/16] 0.0, 128
    %478 = vxpose.xlu0.b32.cont [11/16] 0.0, 128
    %479 = vxpose.xlu0.b32.cont [12/16] 0.0, 128
    %480 = vxpose.xlu0.b32.cont [13/16] 0.0, 128
    %481 = vxpose.xlu0.b32.cont [14/16] 0.0, 128
    %482 = vxpose.xlu0.b32.cont [15/16] 0.0, 128
    %483 = vxpose.xlu0.b32.end [16/16] 0.0, 128
    %v484 = vpop.trf.xlu0
    %v485 = vpop.trf.xlu0
    %v486 = vpop.trf.xlu0
    %v487 = vpop.trf.xlu0
    %v488 = vpop.trf.xlu0
    %v489 = vpop.trf.xlu0
    %v490 = vpop.trf.xlu0
    %v491 = vpop.trf.xlu0
    %v492 = vpop.trf.xlu0
    %v493 = vpop.trf.xlu0
    %v494 = vpop.trf.xlu0
    %v495 = vpop.trf.xlu0
    %v496 = vpop.trf.xlu0
    %v497 = vpop.trf.xlu0
    %v498 = vpop.trf.xlu0
    %v499 = vpop.trf.xlu0
    %vm500 = vcmask 253952
    %501 = vst.msk [vmem:[#allocation11] sm:$0x1] %vm500, %v484
    // Predicated region
    $region54: #{mlp_forward.1} parent=1 // pred_check
      _
    $region55: #{mlp_forward.1} parent=1 // pred_check_branch
      %503 = sbr.rel (0) target = $region57
    $region56: #{mlp_forward.1} parent=1 // pred_region
      %s505 = ssub.s32 16, 16
      %506 = vsyncadd [#allocation5], %s505
      %s508 = sshll.u32 [#allocation11], 4
      %s509 = int_to_ptr.vmem [resolvable:$true] %s508
      %511 = dma.vmem_to_hbm [thread:$0]  %s509, 16, %s9, [#allocation5]
    $region57: #{mlp_forward.1} parent=1 // pred_fallthru
      _
    // Predicated region
    $region58: #{mlp_forward.1} parent=1 // pred_check
      _
    $region59: #{mlp_forward.1} parent=1 // pred_check_branch
      %513 = sbr.rel (0) target = $region61
    $region60: #{mlp_forward.1} parent=1 // pred_region
      %514 = dma.done [#allocation5], 16
    $region61: #{mlp_forward.1} parent=1 // pred_fallthru
      _
    %515 = vsyncpa [#allocation4], 1
    %516 = vsyncpa [#allocation7], 1
    %517 = vsyncpa [#allocation10], 1
    %518 = vsyncpa [#allocation5], 1

</llo_original>
